<compile_context>
chip_gen: v7x
topology: tpu7x:2x2x1
jax: 0.10.0
libtpu: 0.0.40
codegen_flags: <defaults>
</compile_context>

<pallas_src>
import functools

import jax
import jax.numpy as jnp
from jax.experimental import pallas as pl
from jax.experimental.pallas import tpu as pltpu


def _round_up(x, m):
    return ((x + m - 1) // m) * m


def _dnn_fused_kernel(x_ref, w_ref, b_ref, o_ref):
    """Fused DNN forward.

    Grid: (batch_tiles, num_layers); the layer axis is sequential ("arbitrary") and
    the output block index is constant along it, so o_ref acts as the resident
    VMEM activation carry across layers.

    x_ref: [BT, D_pad]        padded input tile         (same block across layers)
    w_ref: [1, D_pad, D_pad]  this layer's padded W
    b_ref: [1, 1, D_pad]      this layer's padded bias
    o_ref: [BT, D_pad]        activation carry / padded output tile
    """
    layer = pl.program_id(1)

    @pl.when(layer == 0)
    def _():
        o_ref[...] = x_ref[...]

    y = jnp.dot(o_ref[...], w_ref[0], preferred_element_type=jnp.float32)
    o_ref[...] = jnp.maximum(y + b_ref[0], 0.0)


@functools.partial(jax.jit, static_argnames=("out_dim",))
def _dnn_forward(x, w_stack, b_stack, out_dim):
    """x: [B, D_in] f32; w_stack: [L, D_pad, D_pad]; b_stack: [L, 1, D_pad]."""
    B, D_in = x.shape
    L, D_pad, _ = w_stack.shape

    # Batch tiling: small batches -> one sublane-aligned tile; large batches -> 256-row
    # tiles so the batch grid axis can be sharded across cores.
    if B >= 256:
        bt = 256
    else:
        bt = _round_up(max(B, 8), 8)
    B_pad = _round_up(max(B, 8), bt)

    # Zero-pad input to lane/sublane-aligned shape (padded rows/cols stay 0 -> exact).
    x_pad = jnp.zeros((B_pad, D_pad), jnp.float32).at[:B, :D_in].set(x)

    out_pad = pl.pallas_call(
        _dnn_fused_kernel,
        out_shape=jax.ShapeDtypeStruct((B_pad, D_pad), jnp.float32),
        grid=(B_pad // bt, L),
        in_specs=[
            pl.BlockSpec((bt, D_pad), lambda b, l: (b, 0)),        # input tile
            pl.BlockSpec((1, D_pad, D_pad), lambda b, l: (l, 0, 0)),  # per-layer weight
            pl.BlockSpec((1, 1, D_pad), lambda b, l: (l, 0, 0)),      # per-layer bias
        ],
        out_specs=pl.BlockSpec((bt, D_pad), lambda b, l: (b, 0)),  # resident carry
        compiler_params=pltpu.CompilerParams(
            dimension_semantics=("parallel", "arbitrary"),
        ),
    )(x_pad, w_stack, b_stack)

    # Slice back to the true batch / final hidden width.
    return out_pad[:B, :out_dim]


class DNNPallas:
    """JAX/Pallas equivalent of the PyTorch DNN module (forward pass)."""

    def __init__(self, inputs_dim, hidden_units, dropout_rate, key):
        # dropout_rate kept for signature parity; in the original forward the dropout
        # result is discarded (`fc - self.dropout(fc)` is unused), so it is a no-op.
        del dropout_rate
        self.hidden_units = [inputs_dim] + list(hidden_units)
        self.out_dim = self.hidden_units[-1]

        # Common padded feature width (lane-aligned).
        self.d_pad = _round_up(max(self.hidden_units), 128)

        ws, bs = [], []
        self.ref_params = []  # unpadded (w, b) for reference checking
        for i in range(len(self.hidden_units) - 1):
            d_in = self.hidden_units[i]
            d_out = self.hidden_units[i + 1]
            key, kw, kb = jax.random.split(key, 3)
            # PyTorch: nn.init.normal_(weight, mean=0, std=0.0001).
            # PyTorch Linear weight is [out, in]; we store transposed [in, out].
            w = 0.0001 * jax.random.normal(kw, (d_in, d_out), dtype=jnp.float32)
            # PyTorch default Linear bias init: U(-1/sqrt(fan_in), 1/sqrt(fan_in)).
            bound = 1.0 / jnp.sqrt(jnp.float32(d_in))
            b = jax.random.uniform(
                kb, (1, d_out), dtype=jnp.float32, minval=-bound, maxval=bound
            )
            self.ref_params.append((w, b))

            # Zero-pad to [D_pad, D_pad] / [1, D_pad]: padded rows/cols are zero, so
            # padded activation columns stay exactly zero through bias + relu.
            w_pad = jnp.zeros((self.d_pad, self.d_pad), jnp.float32)
            w_pad = w_pad.at[:d_in, :d_out].set(w)
            b_pad = jnp.zeros((1, self.d_pad), jnp.float32).at[:, :d_out].set(b)
            ws.append(w_pad)
            bs.append(b_pad)

        self.w_stack = jnp.stack(ws, axis=0)  # [L, D_pad, D_pad]
        self.b_stack = jnp.stack(bs, axis=0)  # [L, 1, D_pad]

    def __call__(self, x):
        return _dnn_forward(x, self.w_stack, self.b_stack, out_dim=self.out_dim)


if __name__ == "__main__":
    key = jax.random.PRNGKey(0)
    k_in, k_model = jax.random.split(key)

    batch = 8
    inputs_dim = 32
    hidden_units = (64, 32)
    dropout_rate = 0.5

    x = jax.random.normal(k_in, (batch, inputs_dim), dtype=jnp.float32)

    model = DNNPallas(inputs_dim, hidden_units, dropout_rate, k_model)
    out = model(x)
    out = jax.block_until_ready(out)

    # Pure-JAX reference check (unpadded params).
    ref = x
    for w, b in model.ref_params:
        ref = jnp.maximum(ref @ w + b, 0.0)

    assert out.shape == (batch, hidden_units[-1]), out.shape
    assert jnp.allclose(out, ref, atol=1e-5), "mismatch vs reference"

    print("KERNEL_OK")
</pallas_src>

<mosaic_0001>
module attributes {stable_mosaic.version = 11 : i64} {
  func.func @_dnn_fused_kernel(%arg0: i32, %arg1: i32, %arg2: memref<8x128xf32, #tpu.memory_space<vmem>>, %arg3: memref<1x128x128xf32, #tpu.memory_space<vmem>>, %arg4: memref<1x1x128xf32, #tpu.memory_space<vmem>>, %arg5: memref<8x128xf32, #tpu.memory_space<vmem>>) attributes {dimension_semantics = [#tpu.dimension_semantics<parallel>, #tpu.dimension_semantics<arbitrary>], iteration_bounds = array<i64: 1, 2>, scalar_prefetch = 0 : i64, scratch_operands = 0 : i64, tpu.core_type = #tpu.core_type<tc>, window_params = [{transform_indices = @transform_0, window_bounds = array<i64: 8, 128>}, {transform_indices = @transform_1, window_bounds = array<i64: 1, 128, 128>}, {transform_indices = @transform_2, window_bounds = array<i64: 1, 1, 128>}, {transform_indices = @transform_3, window_bounds = array<i64: 8, 128>}]} {
    %c0_i32 = arith.constant 0 : i32
    %0 = arith.cmpi eq, %arg1, %c0_i32 : i32
    %1 = arith.extui %0 : i1 to i32
    %c0_i32_0 = arith.constant 0 : i32
    %2 = arith.cmpi ne, %1, %c0_i32_0 : i32
    scf.if %2 {
      %c0_11 = arith.constant 0 : index
      %c0_12 = arith.constant 0 : index
      %14 = vector.load %arg2[%c0_11, %c0_12] : memref<8x128xf32, #tpu.memory_space<vmem>>, vector<8x128xf32>
      %c0_13 = arith.constant 0 : index
      %c0_14 = arith.constant 0 : index
      %15 = vector.load %arg5[%c0_13, %c0_14] : memref<8x128xf32, #tpu.memory_space<vmem>>, vector<8x128xf32>
      tpu.vector_store %arg5[%c0_13, %c0_14], %14 {strides = array<i32>} : memref<8x128xf32, #tpu.memory_space<vmem>>, vector<8x128xf32>,
    } else {
    }
    %c0 = arith.constant 0 : index
    %c0_1 = arith.constant 0 : index
    %3 = vector.load %arg5[%c0, %c0_1] : memref<8x128xf32, #tpu.memory_space<vmem>>, vector<8x128xf32>
    %c0_2 = arith.constant 0 : index
    %c0_3 = arith.constant 0 : index
    %c0_4 = arith.constant 0 : index
    %4 = vector.load %arg3[%c0_2, %c0_3, %c0_4] : memref<1x128x128xf32, #tpu.memory_space<vmem>>, vector<1x128x128xf32>
    %5 = vector.shape_cast %4 : vector<1x128x128xf32> to vector<128x128xf32>
    %cst = arith.constant dense<0.000000e+00> : vector<8x128xf32>
    %6 = tpu.matmul %3, %5, %cst {dimension_numbers = #tpu.dot_dimension_numbers<[1], [0], [0], [1], [0, 0, 1, 1], [], []>} : vector<8x128xf32>, vector<128x128xf32>, vector<8x128xf32> -> vector<8x128xf32>
    %c0_5 = arith.constant 0 : index
    %c0_6 = arith.constant 0 : index
    %c0_7 = arith.constant 0 : index
    %7 = vector.load %arg4[%c0_5, %c0_6, %c0_7] : memref<1x1x128xf32, #tpu.memory_space<vmem>>, vector<1x1x128xf32>
    %8 = vector.shape_cast %7 : vector<1x1x128xf32> to vector<1x128xf32>
    %9 = vector.broadcast %8 : vector<1x128xf32> to vector<8x128xf32>
    %10 = arith.addf %6, %9 : vector<8x128xf32>
    %cst_8 = arith.constant 0.000000e+00 : f32
    %11 = vector.broadcast %cst_8 : f32 to vector<8x128xf32>
    %12 = arith.maximumf %10, %11 : vector<8x128xf32>
    %c0_9 = arith.constant 0 : index
    %c0_10 = arith.constant 0 : index
    %13 = vector.load %arg5[%c0_9, %c0_10] : memref<8x128xf32, #tpu.memory_space<vmem>>, vector<8x128xf32>
    tpu.vector_store %arg5[%c0_9, %c0_10], %12 {strides = array<i32>} : memref<8x128xf32, #tpu.memory_space<vmem>>, vector<8x128xf32>,
    return
  }
  func.func @transform_0(%arg0: i32, %arg1: i32) -> (i32, i32) {
    %c0_i32 = arith.constant 0 : i32
    %c0_i32_0 = arith.constant 0 : i32
    return %arg0, %c0_i32 : i32, i32
  }
  func.func @transform_1(%arg0: i32, %arg1: i32) -> (i32, i32, i32) {
    %c0_i32 = arith.constant 0 : i32
    %c0_i32_0 = arith.constant 0 : i32
    %c0_i32_1 = arith.constant 0 : i32
    return %arg1, %c0_i32, %c0_i32_0 : i32, i32, i32
  }
  func.func @transform_2(%arg0: i32, %arg1: i32) -> (i32, i32, i32) {
    %c0_i32 = arith.constant 0 : i32
    %c0_i32_0 = arith.constant 0 : i32
    %c0_i32_1 = arith.constant 0 : i32
    return %arg1, %c0_i32, %c0_i32_0 : i32, i32, i32
  }
  func.func @transform_3(%arg0: i32, %arg1: i32) -> (i32, i32) {
    %c0_i32 = arith.constant 0 : i32
    %c0_i32_0 = arith.constant 0 : i32
    return %arg0, %c0_i32 : i32, i32
  }
}

</mosaic_0001>

<llo_original>
// kernel: _dnn_forward.1
$region0: #{_dnn_forward.1}
  #allocation0 [shape = 'u32[]', space=smem, size = 0x4, offset = 0x4, fixed_abs, tag = 'smem constant byte address 0x4 - core index']
  #allocation1 [shape = 'u32[144,128]{1,0:T(1,128)}', space=vmem, size = 0x12000, scoped, tag = 'internal scratch']
  %s0 = inlined_call_operand.vmem [shape: f32[8,128], index: 0, kind: input, shape index: {}]
  %s1 = inlined_call_operand.hbm [shape: f32[2,128,128], index: 1, kind: input, shape index: {}]
  %s2 = inlined_call_operand.vmem [shape: f32[2,1,128], index: 2, kind: input, shape index: {}]
  %s3 = inlined_call_operand.hbm [shape: f32[8,128], index: 3, kind: output, shape index: {}]
  %s4 = sld [smem:[#allocation0]]
  $region53: #{_dnn_forward.1} parent=0
    _
  %s6 = ssub.s32 1, %s4
  %s7 = scalar_select 0, %s6, %s4
  $region1: #{_dnn_forward.1} parent=0
    #allocation2 [shape = 'u8[131072]{0}', space=vmem, size = 0x20000, scoped, tag = 'input window, operand 1']
    #allocation3 [shape = 's32[2]{0}', space=sflag, size = 0x8, scoped, tag = 'scoped memory for _dnn_forward.1']
    #allocation4 [shape = 's32[2]{0}', space=sflag, size = 0x8, scoped, tag = 'scoped memory for _dnn_forward.1']
    #allocation5 [shape = 'u8[4096]{0}', space=vmem, size = 0x1000, scoped, tag = 'output window, operand 0, single buffered']
    %8 = vsyncpa [#allocation3], 0
    %s9 = scalar_lea.sflag [#allocation3], 1
    %10 = vsyncpa %s9, 0
    %11 = vsyncpa [#allocation4], 0
    loop: start=0, step=1, limit=4
    $region2: #{_dnn_forward.1} parent=1 // loop_pre_header
      _
    $region3: #{_dnn_forward.1} parent=1 // loop_header
      %s13 = sphi 0, %s17
      %p14 = scmp.ge.s32.totalorder %s13, 4
      %s20 = sphi 0, %s32
      %s21 = sphi 0, %s28
      %s22 = sphi 0, %s20
      %s23 = sphi 0, %s21
      %s24 = sphi 0, %s22
      %s25 = sphi 0, %s23
      %s35 = sphi 0, %s37
      %s38 = sphi 0, %s35
      %s39 = sphi 0, %s38
      %s55 = sphi 0, %s39
      %s61 = sphi 0, %s63
      %s64 = sphi 0, %s61
      %s65 = sphi 0, %s64
      %s81 = sphi 0, %s65
      %s87 = sphi 0, %s89
      %s90 = sphi 0, %s87
      %s91 = sphi 0, %s90
      %s107 = sphi 0, %s91
      %s113 = sphi 0, %s115
      %s116 = sphi 0, %s113
      %s117 = sphi 0, %s116
      %s133 = sphi 0, %s117
    $region4: #{_dnn_forward.1} parent=1 // loop_header_branch
      %16 = sbr.rel (%p14) target = $region8
    $region5: #{_dnn_forward.1} parent=1 // loop_body
      %s18 = ssub.s32 %s13, 1
      %s19 = ssub.s32 %s13, 2
      %s26 = sadd.s32 1, %s21
      %p27 = scmp.ge.s32.totalorder %s26, 2
      %s28 = scalar_select %p27, 0, %s26
      %s29 = sadd.s32 1, %s20
      %s30 = scalar_select %p27, %s29, %s20
      %p31 = scmp.ge.s32.totalorder %s30, 1
      %s32 = scalar_select %p31, 0, %s30
      %s33 = ssub.s32 %s20, %s32
      %p34 = scmp.eq.s32.totalorder %s33, 0
      %s36 = sadd.s32 %s35, 1
      %s37 = scalar_select %p34, %s35, %s36
      %p40 = pneg %p34
      %p41 = scmp.eq.s32.totalorder %s13, 1
      %p42 = por %p40, %p41
      %p43 = scmp.ne.s32.totalorder %s35, %s38
      %p44 = scmp.eq.s32.totalorder %s13, 0
      %p45 = por %p43, %p44
      %p46 = scmp.ne.s32.totalorder %s35, %s38
      %p47 = scmp.eq.s32.totalorder %s18, 1
      %p48 = por %p46, %p47
      %p49 = scmp.ne.s32.totalorder %s38, %s39
      %p50 = scmp.eq.s32.totalorder %s18, 0
      %p51 = por %p49, %p50
      %p52 = scmp.ne.s32.totalorder %s38, %s39
      %p53 = scmp.eq.s32.totalorder %s19, 1
      %p54 = por %p52, %p53
      %p56 = scmp.ne.s32.totalorder %s39, %s55
      %p57 = scmp.eq.s32.totalorder %s19, 0
      %p58 = por %p56, %p57
      %s59 = ssub.s32 %s21, %s28
      %p60 = scmp.eq.s32.totalorder %s59, 0
      %s62 = sadd.s32 %s61, 1
      %s63 = scalar_select %p60, %s61, %s62
      %p66 = pneg %p60
      %p67 = scmp.eq.s32.totalorder %s13, 1
      %p68 = por %p66, %p67
      %p69 = scmp.ne.s32.totalorder %s61, %s64
      %p70 = scmp.eq.s32.totalorder %s13, 0
      %p71 = por %p69, %p70
      %p72 = scmp.ne.s32.totalorder %s61, %s64
      %p73 = scmp.eq.s32.totalorder %s18, 1
      %p74 = por %p72, %p73
      %p75 = scmp.ne.s32.totalorder %s64, %s65
      %p76 = scmp.eq.s32.totalorder %s18, 0
      %p77 = por %p75, %p76
      %p78 = scmp.ne.s32.totalorder %s64, %s65
      %p79 = scmp.eq.s32.totalorder %s19, 1
      %p80 = por %p78, %p79
      %p82 = scmp.ne.s32.totalorder %s65, %s81
      %p83 = scmp.eq.s32.totalorder %s19, 0
      %p84 = por %p82, %p83
      %s85 = ssub.s32 %s21, %s28
      %p86 = scmp.eq.s32.totalorder %s85, 0
      %s88 = sadd.s32 %s87, 1
      %s89 = scalar_select %p86, %s87, %s88
      %p92 = pneg %p86
      %p93 = scmp.eq.s32.totalorder %s13, 1
      %p94 = por %p92, %p93
      %p95 = scmp.ne.s32.totalorder %s87, %s90
      %p96 = scmp.eq.s32.totalorder %s13, 0
      %p97 = por %p95, %p96
      %p98 = scmp.ne.s32.totalorder %s87, %s90
      %p99 = scmp.eq.s32.totalorder %s18, 1
      %p100 = por %p98, %p99
      %p101 = scmp.ne.s32.totalorder %s90, %s91
      %p102 = scmp.eq.s32.totalorder %s18, 0
      %p103 = por %p101, %p102
      %p104 = scmp.ne.s32.totalorder %s90, %s91
      %p105 = scmp.eq.s32.totalorder %s19, 1
      %p106 = por %p104, %p105
      %p108 = scmp.ne.s32.totalorder %s91, %s107
      %p109 = scmp.eq.s32.totalorder %s19, 0
      %p110 = por %p108, %p109
      %s111 = ssub.s32 %s20, %s32
      %p112 = scmp.eq.s32.totalorder %s111, 0
      %s114 = sadd.s32 %s113, 1
      %s115 = scalar_select %p112, %s113, %s114
      %p118 = pneg %p112
      %p119 = scmp.eq.s32.totalorder %s13, 1
      %p120 = por %p118, %p119
      %p121 = scmp.ne.s32.totalorder %s113, %s116
      %p122 = scmp.eq.s32.totalorder %s13, 0
      %p123 = por %p121, %p122
      %p124 = scmp.ne.s32.totalorder %s113, %s116
      %p125 = scmp.eq.s32.totalorder %s18, 1
      %p126 = por %p124, %p125
      %p127 = scmp.ne.s32.totalorder %s116, %s117
      %p128 = scmp.eq.s32.totalorder %s18, 0
      %p129 = por %p127, %p128
      %p130 = scmp.ne.s32.totalorder %s116, %s117
      %p131 = scmp.eq.s32.totalorder %s19, 1
      %p132 = por %p130, %p131
      %p134 = scmp.ne.s32.totalorder %s117, %s133
      %p135 = scmp.eq.s32.totalorder %s19, 0
      %p136 = por %p134, %p135
      %p137 = scmp.le.s32.totalorder 1, %s13
      %p138 = scmp.lt.s32.totalorder %s13, 3
      %p139 = pnand %p137, %p138
      %p140 = pneg %p139
      // Predicated region
      $region9: #{_dnn_forward.1} parent=5 // pred_check
        _
      $region10: #{_dnn_forward.1} parent=5 // pred_check_branch
        %142 = sbr.rel (%p139) target = $region12
      $region11: #{_dnn_forward.1} parent=5 // pred_region
        %s143 = ssub.s32 %s13, 1
        // Predicated region
        $region13: #{_dnn_forward.1} parent=11 // pred_check
          %p144 = pneg %p51
        $region14: #{_dnn_forward.1} parent=11 // pred_check_branch
          %146 = sbr.rel (%p144) target = $region16
        $region15: #{_dnn_forward.1} parent=11 // pred_region
          %p147 = scmp.lt.s32.totalorder %s22, 0
          %s148 = scalar_select %p147, %s22, 0
          %s149 = smul.addr %s148, 8
          %s150 = scalar_lea.vmem %s0, %s149
        $region16: #{_dnn_forward.1} parent=11 // pred_fallthru
          _
      $region12: #{_dnn_forward.1} parent=5 // pred_fallthru
        _
      %p151 = scmp.lt.s32.totalorder %s13, 2
      // Predicated region
      $region17: #{_dnn_forward.1} parent=5 // pred_check
        %p152 = pneg %p151
      $region18: #{_dnn_forward.1} parent=5 // pred_check_branch
        %154 = sbr.rel (%p152) target = $region20
      $region19: #{_dnn_forward.1} parent=5 // pred_region
        // Predicated region
        $region21: #{_dnn_forward.1} parent=19 // pred_check
          %p155 = pneg %p71
        $region22: #{_dnn_forward.1} parent=19 // pred_check_branch
          %157 = sbr.rel (%p155) target = $region24
        $region23: #{_dnn_forward.1} parent=19 // pred_region
          %s158 = sand.u32 %s61, 1
          %s159 = scalar_lea.sflag [#allocation3], %s158
          %s160 = sand.u32 %s61, 1
          %s161 = smul.addr %s160, 128
          %s162 = scalar_lea.vmem [#allocation2], %s161
          %s164 = ssub.s32 2048, 2048
          %165 = vsyncadd %s159, %s164
          %s166 = smul.addr %s21, 16
          %s167 = smul.addr %s166, 128
          %s168 = scalar_lea.hbm %s1, %s167
          %s169 = sshll.u32 %s162, 4
          %s170 = int_to_ptr.vmem [resolvable:$true] %s169
          %175 = dma.hbm_to_vmem [thread:$0]  %s168, 2048, %s170, %s159, 128, 128, 8
        $region24: #{_dnn_forward.1} parent=19 // pred_fallthru
          _
        // Predicated region
        $region25: #{_dnn_forward.1} parent=19 // pred_check
          %p176 = pneg %p97
        $region26: #{_dnn_forward.1} parent=19 // pred_check_branch
          %178 = sbr.rel (%p176) target = $region28
        $region27: #{_dnn_forward.1} parent=19 // pred_region
          %p179 = scmp.lt.s32.totalorder %s21, 1
          %s180 = scalar_select %p179, %s21, 1
          %s181 = scalar_lea.vmem %s2, %s180
        $region28: #{_dnn_forward.1} parent=19 // pred_fallthru
          _
      $region20: #{_dnn_forward.1} parent=5 // pred_fallthru
        _
      %p182 = scmp.le.s32.totalorder 1, %s13
      %p183 = scmp.lt.s32.totalorder %s13, 3
      %p184 = pnand %p182, %p183
      %p185 = pneg %p184
      // Predicated region
      $region29: #{_dnn_forward.1} parent=5 // pred_check
        _
      $region30: #{_dnn_forward.1} parent=5 // pred_check_branch
        %187 = sbr.rel (%p184) target = $region32
      $region31: #{_dnn_forward.1} parent=5 // pred_region
        %s188 = ssub.s32 %s13, 1
        %s189 = sand.u32 %s64, 1
        %s190 = scalar_lea.sflag [#allocation3], %s189
        %s191 = sand.u32 %s64, 1
        %s192 = smul.addr %s191, 128
        %s193 = scalar_lea.vmem [#allocation2], %s192
        // Predicated region
        $region33: #{_dnn_forward.1} parent=31 // pred_check
          %p194 = pneg %p77
        $region34: #{_dnn_forward.1} parent=31 // pred_check_branch
          %196 = sbr.rel (%p194) target = $region36
        $region35: #{_dnn_forward.1} parent=31 // pred_region
          %197 = dma.done %s190, 2048
        $region36: #{_dnn_forward.1} parent=31 // pred_fallthru
          _
        %p198 = scmp.lt.s32.totalorder %s22, 0
        %s199 = scalar_select %p198, %s22, 0
        %s200 = smul.addr %s199, 8
        %s201 = scalar_lea.vmem %s0, %s200
        %p202 = pneg %p51
        %p203 = pneg %p48
        %s204 = sand.u32 %s64, 1
        %s205 = scalar_lea.sflag [#allocation3], %s204
        %s206 = sand.u32 %s64, 1
        %s207 = smul.addr %s206, 128
        %s208 = scalar_lea.vmem [#allocation2], %s207
        %p209 = pneg %p77
        %p210 = pneg %p74
        %p211 = scmp.lt.s32.totalorder %s23, 1
        %s212 = scalar_select %p211, %s23, 1
        %s213 = scalar_lea.vmem %s2, %s212
        %p214 = pneg %p103
        %p215 = pneg %p100
        %p216 = pneg %p129
        %p217 = pneg %p126
        %p218 = scmp.lt.s32.totalorder %s22, 0
        %s219 = scalar_select %p218, %s22, 0
        %s220 = smul.addr %s219, 8
        %s221 = scalar_lea.vmem %s0, %s220
        %p222 = scmp.lt.s32.totalorder %s23, 1
        %s223 = scalar_select %p222, %s23, 1
        %s224 = scalar_lea.vmem %s2, %s223
        %p225 = scmp.eq.s32.totalorder %s23, 0
        // Predicated region
        $region37: #{_dnn_forward.1} parent=31 // pred_check
          %p226 = pneg %p225
        $region38: #{_dnn_forward.1} parent=31 // pred_check_branch
          %228 = sbr.rel (%p226) target = $region40
        $region39: #{_dnn_forward.1} parent=31 // pred_region
          %v229 = vld [vmem:[%s221] sm:$0xff]
          %230 = vst [vmem:[#allocation5] sm:$0xff] %v229
        $region40: #{_dnn_forward.1} parent=31 // pred_fallthru
          _
        %v231 = vld [vmem:[#allocation5] sm:$0xff]
        %v232 = vld [vmem:[%s193] sm:$0xff]
        %v233 = vld [vmem:[%s193 + $0x8] sm:$0xff]
        %v234 = vld [vmem:[%s193 + $0x10] sm:$0xff]
        %v235 = vld [vmem:[%s193 + $0x18] sm:$0xff]
        %v236 = vld [vmem:[%s193 + $0x20] sm:$0xff]
        %v237 = vld [vmem:[%s193 + $0x28] sm:$0xff]
        %v238 = vld [vmem:[%s193 + $0x30] sm:$0xff]
        %v239 = vld [vmem:[%s193 + $0x38] sm:$0xff]
        %v240 = vld [vmem:[%s193 + $0x40] sm:$0xff]
        %v241 = vld [vmem:[%s193 + $0x48] sm:$0xff]
        %v242 = vld [vmem:[%s193 + $0x50] sm:$0xff]
        %v243 = vld [vmem:[%s193 + $0x58] sm:$0xff]
        %v244 = vld [vmem:[%s193 + $0x60] sm:$0xff]
        %v245 = vld [vmem:[%s193 + $0x68] sm:$0xff]
        %v246 = vld [vmem:[%s193 + $0x70] sm:$0xff]
        %v247 = vld [vmem:[%s193 + $0x78] sm:$0xff]
        %v248 = vld [vmem:[%s224] sm:$0x1]
        %v250 = vlaneseq
        %v251 = vshrl.u32 %v250, 7
        %v252 = vsub.s32 0, %v251
        %v253 = vrot.slane %v248, %v252
        %255 = vmatprep.subr.mxu0 0.0
        %256 = vmatpush1.msra.mxu0 %v232
        %257 = vmatprep.subr.mxu0 0.0
        %258 = vmatpush1.msra.mxu0 %v233
        %259 = vmatprep.subr.mxu0 0.0
        %260 = vmatpush1.msra.mxu0 %v234
        %261 = vmatprep.subr.mxu0 0.0
        %262 = vmatpush1.msra.mxu0 %v235
        %263 = vmatprep.subr.mxu0 0.0
        %264 = vmatpush1.msra.mxu0 %v236
        %265 = vmatprep.subr.mxu0 0.0
        %266 = vmatpush1.msra.mxu0 %v237
        %267 = vmatprep.subr.mxu0 0.0
        %268 = vmatpush1.msra.mxu0 %v238
        %269 = vmatprep.subr.mxu0 0.0
        %270 = vmatpush1.msra.mxu0 %v239
        %271 = vmatprep.subr.mxu0 0.0
        %272 = vmatpush1.msra.mxu0 %v240
        %273 = vmatprep.subr.mxu0 0.0
        %274 = vmatpush1.msra.mxu0 %v241
        %275 = vmatprep.subr.mxu0 0.0
        %276 = vmatpush1.msra.mxu0 %v242
        %277 = vmatprep.subr.mxu0 0.0
        %278 = vmatpush1.msra.mxu0 %v243
        %279 = vmatprep.subr.mxu0 0.0
        %280 = vmatpush1.msra.mxu0 %v244
        %281 = vmatprep.subr.mxu0 0.0
        %282 = vmatpush1.msra.mxu0 %v245
        %283 = vmatprep.subr.mxu0 0.0
        %284 = vmatpush1.msra.mxu0 %v246
        %285 = vmatprep.subr.mxu0 0.0
        %286 = vmatpush1.msra.mxu0 %v247
        %287 = vmatprep.subr.mxu0 0.0
        %288 = vmatpush1.msra.mxu0 0.0
        %289 = vmatprep.subr.mxu0 0.0
        %290 = vmatpush1.msra.mxu0 0.0
        %291 = vmatprep.subr.mxu0 0.0
        %292 = vmatpush1.msra.mxu0 0.0
        %293 = vmatprep.subr.mxu0 0.0
        %294 = vmatpush1.msra.mxu0 0.0
        %295 = vmatprep.subr.mxu0 0.0
        %296 = vmatpush1.msra.mxu0 0.0
        %297 = vmatprep.subr.mxu0 0.0
        %298 = vmatpush1.msra.mxu0 0.0
        %299 = vmatprep.subr.mxu0 0.0
        %300 = vmatpush1.msra.mxu0 0.0
        %301 = vmatprep.subr.mxu0 0.0
        %302 = vmatpush1.msra.mxu0 0.0
        %303 = vmatprep.subr.mxu0 0.0
        %304 = vmatpush1.msra.mxu0 0.0
        %305 = vmatprep.subr.mxu0 0.0
        %306 = vmatpush1.msra.mxu0 0.0
        %307 = vmatprep.subr.mxu0 0.0
        %308 = vmatpush1.msra.mxu0 0.0
        %309 = vmatprep.subr.mxu0 0.0
        %310 = vmatpush1.msra.mxu0 0.0
        %311 = vmatprep.subr.mxu0 0.0
        %312 = vmatpush1.msra.mxu0 0.0
        %313 = vmatprep.subr.mxu0 0.0
        %314 = vmatpush1.msra.mxu0 0.0
        %315 = vmatprep.subr.mxu0 0.0
        %316 = vmatpush1.msra.mxu0 0.0
        %317 = vmatprep.subr.mxu0 0.0
        %318 = vmatpush1.msra.mxu0 0.0
        %319 = vmatprep.mubr.f32.mxu0 0.0
        %320 = vmatmul.mubr.f32.gmra.mrb[0].mxu0 %v231
        %v321 = vpop.f32.mrb[0].mxu0
        %v322 = vadd.f32 %v253, %v321
        %v323 = vpop.f32.mrb[0].mxu0
        %324 = vdwg.mxu0
        %v325 = vmax.f32 %v322, 0.0
        %326 = vst [vmem:[#allocation5] sm:$0xff] %v325
        // Predicated region
        $region41: #{_dnn_forward.1} parent=31 // pred_check
          %p327 = pneg %p126
        $region42: #{_dnn_forward.1} parent=31 // pred_check_branch
          %329 = sbr.rel (%p327) target = $region44
        $region43: #{_dnn_forward.1} parent=31 // pred_region
          %s331 = ssub.s32 128, 128
          %332 = vsyncadd [#allocation4], %s331
          %s333 = smul.addr %s22, 128
          %s334 = scalar_lea.hbm %s3, %s333
          %s336 = sshll.u32 [#allocation5], 4
          %s337 = int_to_ptr.vmem [resolvable:$true] %s336
          %339 = dma.vmem_to_hbm [thread:$0]  %s337, 128, %s334, [#allocation4]
        $region44: #{_dnn_forward.1} parent=31 // pred_fallthru
          _
        // Predicated region
        $region45: #{_dnn_forward.1} parent=31 // pred_check
          %p340 = pneg %p126
        $region46: #{_dnn_forward.1} parent=31 // pred_check_branch
          %342 = sbr.rel (%p340) target = $region48
        $region47: #{_dnn_forward.1} parent=31 // pred_region
          %343 = dma.done [#allocation4], 128
        $region48: #{_dnn_forward.1} parent=31 // pred_fallthru
          _
      $region32: #{_dnn_forward.1} parent=5 // pred_fallthru
        _
      %p344 = scmp.le.s32.totalorder 2, %s13
      // Predicated region
      $region49: #{_dnn_forward.1} parent=5 // pred_check
        %p345 = pneg %p344
      $region50: #{_dnn_forward.1} parent=5 // pred_check_branch
        %347 = sbr.rel (%p345) target = $region52
      $region51: #{_dnn_forward.1} parent=5 // pred_region
        %s348 = ssub.s32 %s13, 2
      $region52: #{_dnn_forward.1} parent=5 // pred_fallthru
        _
    $region6: #{_dnn_forward.1} parent=1 // loop_footer
      %s17 = sadd.s32 1, %s13
    $region7: #{_dnn_forward.1} parent=1 // loop_footer_branch
      %12 = sbr.rel target = $region3
    $region8: #{_dnn_forward.1} parent=1 // loop_exit
      _
    %349 = vsyncpa [#allocation3], 1
    %s350 = scalar_lea.sflag [#allocation3], 1
    %351 = vsyncpa %s350, 1
    %352 = vsyncpa [#allocation4], 1
    %s353 = scalar_lea.sflag [#allocation4], 1
    %354 = vsyncpa %s353, 1

</llo_original>
